<compile_context>
chip_gen: v7x
topology: tpu7x:2x2x1
jax: 0.10.0
libtpu: 0.0.40
codegen_flags: <defaults>
</compile_context>

<pallas_src>
import functools
import math

import jax
import jax.numpy as jnp
from jax.experimental import pallas as pl
from jax.experimental.pallas import tpu as pltpu


def _arcface_kernel(label_ref, x_ref, inv_xn_ref, w_ref, out_ref, cos_ref, *,
                    s, cos_m, sin_m, th, mm, easy_margin):
    j = pl.program_id(0)
    tile_n = out_ref.shape[1]

    # MXU: bf16 x (resident) @ bf16 column-normalized W tile, f32 accumulate.
    ip = jnp.dot(x_ref[...], w_ref[...],
                 preferred_element_type=jnp.float32)                # (B, tn)

    # cosine = <x, w_hat> / ||x||, clamped to [-1, 1]. inv_xn precomputed (f32).
    cos = jnp.clip(ip * inv_xn_ref[...], -1.0, 1.0)

    # Margin-adjusted logit, element-wise (only selected at the label column).
    sin = jnp.sqrt(jnp.maximum(1.0 - cos * cos, 0.0))
    cos_theta_m = cos * cos_m - sin * sin_m
    if easy_margin:
        final = jnp.where(cos > 0.0, cos_theta_m, cos)
    else:
        final = jnp.where(cos > th, cos_theta_m, cos - mm)

    # One-hot scatter == iota compare, offset by this tile's column base.
    labels = label_ref[...]                                         # (B, 1) i32
    cols = jax.lax.broadcasted_iota(jnp.int32, cos.shape, 1) + j * tile_n
    hit = cols == labels

    sc = s * cos                                                    # fold s once
    out_ref[...] = jnp.where(hit, s * final, sc)
    cos_ref[...] = sc.astype(cos_ref.dtype)


def prepare_arcface_params(kernel_w):
    """One-time parameter prep: fold the column l2-norm into a bf16 weight copy.

    In a real model this runs at parameter init, not per forward call.
    """
    kernel_w = kernel_w.astype(jnp.float32)                         # (D, N)
    inv_wnorm = jax.lax.rsqrt(
        jnp.sum(kernel_w * kernel_w, axis=0, keepdims=True))        # (1, N)
    return (kernel_w * inv_wnorm).astype(jnp.bfloat16)              # (D, N) bf16


def _pick_tile_n(B, D, N, cos_bytes):
    """Largest class tile whose double-buffers fit a v7x-safe VMEM budget,
    preferring >= 4 grid steps so pipelining / the 2-TC split stay useful."""
    budget = 40 << 20
    fallback = None
    for t in (8192, 4096, 2048, 1024, 512, 256, 128):
        if N % t:
            continue
        need = 2 * t * (2 * D + 4 * B + cos_bytes * B)   # W + both outputs, x2 buf
        if need > budget:
            continue
        if N // t >= 4:
            return t
        if fallback is None:
            fallback = t          # largest fitting divisor even if < 4 steps
    return fallback if fallback is not None else N


def arcface_forward(embeddings, label, w_norm_bf16, *,
                    s=64.0, m=0.5, easy_margin=False, tile_n=None,
                    cos_dtype=jnp.float32):
    """embeddings: (B, D) f32, label: (B,) int, w_norm_bf16: (D, N) bf16
    (column-l2-normalized, from prepare_arcface_params)."""
    B, D = embeddings.shape
    D2, N = w_norm_bf16.shape
    assert D == D2

    cos_bytes = jnp.dtype(cos_dtype).itemsize
    if tile_n is None:
        tile_n = _pick_tile_n(B, D, N, cos_bytes)
    assert N % tile_n == 0, "out_features must be a multiple of tile_n"

    # Hoisted loop-invariant x work: f32 row inverse norms + bf16 copy for MXU.
    x = embeddings.astype(jnp.float32)
    inv_xn = jax.lax.rsqrt(jnp.sum(x * x, axis=1, keepdims=True))   # (B, 1) f32
    x_bf16 = x.astype(jnp.bfloat16)                                 # (B, D) bf16

    # VMEM budget: double-buffered weight tile + both output tiles, plus the
    # small resident blocks; raise the scoped limit if a big tile needs it.
    need = 2 * tile_n * (2 * D + 4 * B + cos_bytes * B) + B * (2 * D + 4 + 4)
    vmem_limit = int(min(max(need + (8 << 20), 32 << 20), 60 << 20))

    kern = functools.partial(
        _arcface_kernel,
        s=float(s), cos_m=math.cos(m), sin_m=math.sin(m),
        th=math.cos(math.pi - m), mm=math.sin(math.pi - m) * m,
        easy_margin=easy_margin)

    out, cos_s = pl.pallas_call(
        kern,
        grid=(N // tile_n,),
        out_shape=(jax.ShapeDtypeStruct((B, N), jnp.float32),
                   jax.ShapeDtypeStruct((B, N), cos_dtype)),
        in_specs=[
            pl.BlockSpec((B, 1), lambda j: (0, 0)),                 # label (VMEM)
            pl.BlockSpec((B, D), lambda j: (0, 0)),                 # x bf16 (resident)
            pl.BlockSpec((B, 1), lambda j: (0, 0)),                 # 1/||x|| (resident)
            pl.BlockSpec((D, tile_n), lambda j: (0, j)),            # weight tile
        ],
        out_specs=(
            pl.BlockSpec((B, tile_n), lambda j: (0, j)),
            pl.BlockSpec((B, tile_n), lambda j: (0, j)),
        ),
        compiler_params=pltpu.CompilerParams(
            dimension_semantics=("parallel",),
            vmem_limit_bytes=vmem_limit),
    )(label.reshape(B, 1).astype(jnp.int32), x_bf16, inv_xn, w_norm_bf16)
    return out, cos_s


def _reference(embeddings, label, kernel_w, *, s=64.0, m=0.5, easy_margin=False):
    # Pure-JAX f32 reference mirroring the PyTorch module forward.
    cos_m, sin_m = math.cos(m), math.sin(m)
    th = math.cos(math.pi - m)
    mm = math.sin(math.pi - m) * m
    emb = embeddings / jnp.linalg.norm(embeddings, axis=1, keepdims=True)
    kn = kernel_w / jnp.linalg.norm(kernel_w, axis=0, keepdims=True)
    cos = jnp.clip(emb @ kn, -1.0, 1.0)
    t = cos[jnp.arange(embeddings.shape[0]), label][:, None]
    sin_t = jnp.sqrt(1.0 - t * t)
    cos_tm = t * cos_m - sin_t * sin_m
    if easy_margin:
        final = jnp.where(t > 0.0, cos_tm, t)
    else:
        final = jnp.where(t > th, cos_tm, t - mm)
    one_hot = jax.nn.one_hot(label, kernel_w.shape[1], dtype=cos.dtype)
    out = jnp.where(one_hot > 0.0, final, cos) * s
    return out, cos * s


if __name__ == "__main__":
    B, in_features, out_features = 8, 128, 1024
    s_val, m_val = 64.0, 0.5

    key = jax.random.PRNGKey(0)
    kw, kx, kl = jax.random.split(key, 3)

    # Module init: normal(0, 1) kernel of shape (in, out), column-l2-normalized.
    kernel_w = jax.random.normal(kw, (in_features, out_features), dtype=jnp.float32)
    kernel_w = kernel_w / jnp.linalg.norm(kernel_w, axis=0, keepdims=True)

    embeddings = jax.random.normal(kx, (B, in_features), dtype=jnp.float32)
    label = jax.random.randint(kl, (B,), 0, out_features, dtype=jnp.int32)

    w_norm_bf16 = prepare_arcface_params(kernel_w)   # hoisted out of forward
    out, cos_s = arcface_forward(embeddings, label, w_norm_bf16,
                                 s=s_val, m=m_val, easy_margin=False)
    jax.block_until_ready((out, cos_s))

    ref_out, ref_cos = _reference(embeddings, label, kernel_w,
                                  s=s_val, m=m_val, easy_margin=False)
    # bf16 weight/activation streaming -> loosened tolerance vs pure-f32 ref.
    assert jnp.allclose(out, ref_out, atol=1e-1, rtol=2e-2), "output mismatch"
    assert jnp.allclose(cos_s.astype(jnp.float32), ref_cos,
                        atol=1e-1, rtol=2e-2), "origin_cos mismatch"

    print("KERNEL_OK")
</pallas_src>

<mosaic_0001>
module attributes {stable_mosaic.version = 11 : i64} {
  func.func @_arcface_kernel(%arg0: i32, %arg1: memref<8x1xi32, #tpu.memory_space<vmem>>, %arg2: memref<8x128xbf16, #tpu.memory_space<vmem>>, %arg3: memref<8x1xf32, #tpu.memory_space<vmem>>, %arg4: memref<128x256xbf16, #tpu.memory_space<vmem>>, %arg5: memref<8x256xf32, #tpu.memory_space<vmem>>, %arg6: memref<8x256xf32, #tpu.memory_space<vmem>>) attributes {dimension_semantics = [#tpu.dimension_semantics<parallel>], iteration_bounds = array<i64: 4>, scalar_prefetch = 0 : i64, scratch_operands = 0 : i64, tpu.core_type = #tpu.core_type<tc>, window_params = [{pipeline_mode = #tpu.pipeline_mode<synchronous>, transform_indices = @transform_0, window_bounds = array<i64: 8, 1>}, {pipeline_mode = #tpu.pipeline_mode<synchronous>, transform_indices = @transform_1, window_bounds = array<i64: 8, 128>}, {pipeline_mode = #tpu.pipeline_mode<synchronous>, transform_indices = @transform_2, window_bounds = array<i64: 8, 1>}, {transform_indices = @transform_3, window_bounds = array<i64: 128, 256>}, {transform_indices = @transform_4, window_bounds = array<i64: 8, 256>}, {transform_indices = @transform_5, window_bounds = array<i64: 8, 256>}]} {
    %c0 = arith.constant 0 : index
    %c0_0 = arith.constant 0 : index
    %0 = vector.load %arg2[%c0, %c0_0] : memref<8x128xbf16, #tpu.memory_space<vmem>>, vector<8x128xbf16>
    %c0_1 = arith.constant 0 : index
    %c0_2 = arith.constant 0 : index
    %1 = vector.load %arg4[%c0_1, %c0_2] : memref<128x256xbf16, #tpu.memory_space<vmem>>, vector<128x256xbf16>
    %cst = arith.constant dense<0.000000e+00> : vector<8x256xf32>
    %2 = tpu.matmul %0, %1, %cst {dimension_numbers = #tpu.dot_dimension_numbers<[1], [0], [0], [1], [0, 0, 1, 1], [], []>} : vector<8x128xbf16>, vector<128x256xbf16>, vector<8x256xf32> -> vector<8x256xf32>
    %c0_3 = arith.constant 0 : index
    %c0_4 = arith.constant 0 : index
    %3 = vector.load %arg3[%c0_3, %c0_4] : memref<8x1xf32, #tpu.memory_space<vmem>>, vector<8x1xf32>
    %4 = vector.broadcast %3 : vector<8x1xf32> to vector<8x256xf32>
    %5 = arith.mulf %2, %4 : vector<8x256xf32>
    %cst_5 = arith.constant -1.000000e+00 : f32
    %cst_6 = arith.constant 1.000000e+00 : f32
    %6 = vector.broadcast %cst_5 : f32 to vector<8x256xf32>
    %7 = arith.maximumf %6, %5 : vector<8x256xf32>
    %8 = vector.broadcast %cst_6 : f32 to vector<8x256xf32>
    %9 = arith.minimumf %8, %7 : vector<8x256xf32>
    %10 = arith.mulf %9, %9 : vector<8x256xf32>
    %cst_7 = arith.constant 1.000000e+00 : f32
    %11 = vector.broadcast %cst_7 : f32 to vector<8x256xf32>
    %12 = arith.subf %11, %10 : vector<8x256xf32>
    %cst_8 = arith.constant 0.000000e+00 : f32
    %13 = vector.broadcast %cst_8 : f32 to vector<8x256xf32>
    %14 = arith.maximumf %12, %13 : vector<8x256xf32>
    %15 = math.sqrt %14 : vector<8x256xf32>
    %cst_9 = arith.constant 0.87758255 : f32
    %16 = vector.broadcast %cst_9 : f32 to vector<8x256xf32>
    %17 = arith.mulf %9, %16 : vector<8x256xf32>
    %cst_10 = arith.constant 0.47942555 : f32
    %18 = vector.broadcast %cst_10 : f32 to vector<8x256xf32>
    %19 = arith.mulf %15, %18 : vector<8x256xf32>
    %20 = arith.subf %17, %19 : vector<8x256xf32>
    %cst_11 = arith.constant -0.87758255 : f32
    %21 = vector.broadcast %cst_11 : f32 to vector<8x256xf32>
    %22 = arith.cmpf ogt, %9, %21 : vector<8x256xf32>
    %cst_12 = arith.constant 0.239712775 : f32
    %23 = vector.broadcast %cst_12 : f32 to vector<8x256xf32>
    %24 = arith.subf %9, %23 : vector<8x256xf32>
    %25 = arith.select %22, %20, %24 : vector<8x256xi1>, vector<8x256xf32>
    %c0_13 = arith.constant 0 : index
    %c0_14 = arith.constant 0 : index
    %26 = vector.load %arg1[%c0_13, %c0_14] : memref<8x1xi32, #tpu.memory_space<vmem>>, vector<8x1xi32>
    %27 = tpu.iota {dimensions = array<i32: 1>} : vector<8x256xi32>
    %c256_i32 = arith.constant 256 : i32
    %28 = arith.muli %arg0, %c256_i32 : i32
    %29 = vector.broadcast %28 : i32 to vector<8x256xi32>
    %30 = arith.addi %27, %29 : vector<8x256xi32>
    %31 = vector.broadcast %26 : vector<8x1xi32> to vector<8x256xi32>
    %32 = arith.cmpi eq, %30, %31 : vector<8x256xi32>
    %cst_15 = arith.constant 6.400000e+01 : f32
    %33 = vector.broadcast %cst_15 : f32 to vector<8x256xf32>
    %34 = arith.mulf %33, %9 : vector<8x256xf32>
    %cst_16 = arith.constant 6.400000e+01 : f32
    %35 = vector.broadcast %cst_16 : f32 to vector<8x256xf32>
    %36 = arith.mulf %35, %25 : vector<8x256xf32>
    %37 = arith.select %32, %36, %34 : vector<8x256xi1>, vector<8x256xf32>
    %c0_17 = arith.constant 0 : index
    %c0_18 = arith.constant 0 : index
    %38 = vector.load %arg5[%c0_17, %c0_18] : memref<8x256xf32, #tpu.memory_space<vmem>>, vector<8x256xf32>
    tpu.vector_store %arg5[%c0_17, %c0_18], %37 {strides = array<i32>} : memref<8x256xf32, #tpu.memory_space<vmem>>, vector<8x256xf32>,
    %c0_19 = arith.constant 0 : index
    %c0_20 = arith.constant 0 : index
    %39 = vector.load %arg6[%c0_19, %c0_20] : memref<8x256xf32, #tpu.memory_space<vmem>>, vector<8x256xf32>
    tpu.vector_store %arg6[%c0_19, %c0_20], %34 {strides = array<i32>} : memref<8x256xf32, #tpu.memory_space<vmem>>, vector<8x256xf32>,
    return
  }
  func.func @transform_0(%arg0: i32) -> (i32, i32) {
    %c0_i32 = arith.constant 0 : i32
    %c0_i32_0 = arith.constant 0 : i32
    %c0_i32_1 = arith.constant 0 : i32
    return %c0_i32, %c0_i32_0 : i32, i32
  }
  func.func @transform_1(%arg0: i32) -> (i32, i32) {
    %c0_i32 = arith.constant 0 : i32
    %c0_i32_0 = arith.constant 0 : i32
    %c0_i32_1 = arith.constant 0 : i32
    return %c0_i32, %c0_i32_0 : i32, i32
  }
  func.func @transform_2(%arg0: i32) -> (i32, i32) {
    %c0_i32 = arith.constant 0 : i32
    %c0_i32_0 = arith.constant 0 : i32
    %c0_i32_1 = arith.constant 0 : i32
    return %c0_i32, %c0_i32_0 : i32, i32
  }
  func.func @transform_3(%arg0: i32) -> (i32, i32) {
    %c0_i32 = arith.constant 0 : i32
    %c0_i32_0 = arith.constant 0 : i32
    return %c0_i32, %arg0 : i32, i32
  }
  func.func @transform_4(%arg0: i32) -> (i32, i32) {
    %c0_i32 = arith.constant 0 : i32
    %c0_i32_0 = arith.constant 0 : i32
    return %c0_i32, %arg0 : i32, i32
  }
  func.func @transform_5(%arg0: i32) -> (i32, i32) {
    %c0_i32 = arith.constant 0 : i32
    %c0_i32_0 = arith.constant 0 : i32
    return %c0_i32, %arg0 : i32, i32
  }
}

</mosaic_0001>

<llo_original>
// kernel: tpu_custom_call.1
$region0: #{tpu_custom_call.1}
  #allocation0 [shape = 'u32[]', space=smem, size = 0x4, offset = 0x4, fixed_abs, tag = 'smem constant byte address 0x4 - core index']
  #allocation1 [shape = 'u32[144,128]{1,0:T(1,128)}', space=vmem, size = 0x12000, scoped, tag = 'internal scratch']
  %s0 = inlined_call_operand.vmem [shape: s32[8,1], index: 0, kind: input, shape index: {}]
  %s1 = inlined_call_operand.vmem [shape: bf16[8,128], index: 1, kind: input, shape index: {}]
  %s2 = inlined_call_operand.vmem [shape: f32[8,1], index: 2, kind: input, shape index: {}]
  %s3 = inlined_call_operand.hbm [shape: bf16[128,1024], index: 3, kind: input, shape index: {}]
  %s4 = inlined_call_operand.hbm [shape: f32[8,1024], index: 4, kind: output, shape index: {0}]
  %s5 = inlined_call_operand.hbm [shape: f32[8,1024], index: 5, kind: output, shape index: {1}]
  %6 = xla_tuple %s4, %s5
  %s7 = sld [smem:[#allocation0]]
  $region61: #{tpu_custom_call.1} parent=0
    _
  %s9 = ssub.s32 1, %s7
  %s10 = scalar_select 0, %s9, %s7
  $region1: #{tpu_custom_call.1} parent=0
    #allocation2 [shape = 'u8[131072]{0}', space=vmem, size = 0x20000, scoped, tag = 'input window, operand 3']
    #allocation3 [shape = 's32[2]{0}', space=sflag, size = 0x8, scoped, tag = 'scoped memory for tpu_custom_call.1']
    #allocation4 [shape = 's32[2]{0}', space=sflag, size = 0x8, scoped, tag = 'scoped memory for tpu_custom_call.1']
    #allocation5 [shape = 'u8[16384]{0}', space=vmem, size = 0x4000, scoped, tag = 'output window, operand 0']
    #allocation6 [shape = 'u8[16384]{0}', space=vmem, size = 0x4000, scoped, tag = 'output window, operand 1']
    #allocation7 [shape = 's32[2]{0}', space=sflag, size = 0x8, scoped, tag = 'scoped memory for tpu_custom_call.1']
    %11 = vsyncpa [#allocation3], 0
    %s12 = scalar_lea.sflag [#allocation3], 1
    %13 = vsyncpa %s12, 0
    %14 = vsyncpa [#allocation4], 0
    %s15 = scalar_lea.sflag [#allocation4], 1
    %16 = vsyncpa %s15, 0
    %17 = vsyncpa [#allocation7], 0
    %s18 = scalar_lea.sflag [#allocation7], 1
    %19 = vsyncpa %s18, 0
    loop: start=0, step=1, limit=6
    $region2: #{tpu_custom_call.1} parent=1 // loop_pre_header
      _
    $region3: #{tpu_custom_call.1} parent=1 // loop_header
      %s21 = sphi 0, %s25
      %p22 = scmp.ge.s32.totalorder %s21, 6
      %s29 = sphi 0, %s29
      %s31 = sphi 0, %s29
      %s32 = sphi 0, %s31
      %s46 = sphi 0, %s32
      %s50 = sphi 0, %s50
      %s52 = sphi 0, %s50
      %s53 = sphi 0, %s52
      %s67 = sphi 0, %s53
      %s71 = sphi 0, %s71
      %s73 = sphi 0, %s71
      %s74 = sphi 0, %s73
      %s88 = sphi 0, %s74
      %s94 = sphi 0, %s96
      %s97 = sphi 0, %s94
      %s98 = sphi 0, %s97
      %s114 = sphi 0, %s98
      %s120 = sphi 0, %s122
      %s123 = sphi 0, %s120
      %s124 = sphi 0, %s123
      %s140 = sphi 0, %s124
      %s146 = sphi 0, %s148
      %s149 = sphi 0, %s146
      %s150 = sphi 0, %s149
      %s166 = sphi 0, %s150
    $region4: #{tpu_custom_call.1} parent=1 // loop_header_branch
      %24 = sbr.rel (%p22) target = $region8
    $region5: #{tpu_custom_call.1} parent=1 // loop_body
      %s26 = ssub.s32 %s21, 1
      %s27 = ssub.s32 %s21, 2
      %s28 = sadd.s32 %s21, 1
      %s30 = sadd.s32 %s29, 1
      %p33 = scmp.eq.s32.totalorder %s21, 3
      %p34 = scmp.ne.s32.totalorder %s29, %s31
      %p35 = scmp.eq.s32.totalorder %s21, 0
      %p36 = por %p34, %p35
      %p37 = scmp.ne.s32.totalorder %s29, %s31
      %p38 = scmp.eq.s32.totalorder %s26, 3
      %p39 = por %p37, %p38
      %p40 = scmp.ne.s32.totalorder %s31, %s32
      %p41 = scmp.eq.s32.totalorder %s26, 0
      %p42 = por %p40, %p41
      %p43 = scmp.ne.s32.totalorder %s31, %s32
      %p44 = scmp.eq.s32.totalorder %s27, 3
      %p45 = por %p43, %p44
      %p47 = scmp.ne.s32.totalorder %s32, %s46
      %p48 = scmp.eq.s32.totalorder %s27, 0
      %p49 = por %p47, %p48
      %s51 = sadd.s32 %s50, 1
      %p54 = scmp.eq.s32.totalorder %s21, 3
      %p55 = scmp.ne.s32.totalorder %s50, %s52
      %p56 = scmp.eq.s32.totalorder %s21, 0
      %p57 = por %p55, %p56
      %p58 = scmp.ne.s32.totalorder %s50, %s52
      %p59 = scmp.eq.s32.totalorder %s26, 3
      %p60 = por %p58, %p59
      %p61 = scmp.ne.s32.totalorder %s52, %s53
      %p62 = scmp.eq.s32.totalorder %s26, 0
      %p63 = por %p61, %p62
      %p64 = scmp.ne.s32.totalorder %s52, %s53
      %p65 = scmp.eq.s32.totalorder %s27, 3
      %p66 = por %p64, %p65
      %p68 = scmp.ne.s32.totalorder %s53, %s67
      %p69 = scmp.eq.s32.totalorder %s27, 0
      %p70 = por %p68, %p69
      %s72 = sadd.s32 %s71, 1
      %p75 = scmp.eq.s32.totalorder %s21, 3
      %p76 = scmp.ne.s32.totalorder %s71, %s73
      %p77 = scmp.eq.s32.totalorder %s21, 0
      %p78 = por %p76, %p77
      %p79 = scmp.ne.s32.totalorder %s71, %s73
      %p80 = scmp.eq.s32.totalorder %s26, 3
      %p81 = por %p79, %p80
      %p82 = scmp.ne.s32.totalorder %s73, %s74
      %p83 = scmp.eq.s32.totalorder %s26, 0
      %p84 = por %p82, %p83
      %p85 = scmp.ne.s32.totalorder %s73, %s74
      %p86 = scmp.eq.s32.totalorder %s27, 3
      %p87 = por %p85, %p86
      %p89 = scmp.ne.s32.totalorder %s74, %s88
      %p90 = scmp.eq.s32.totalorder %s27, 0
      %p91 = por %p89, %p90
      %s92 = ssub.s32 %s21, %s28
      %p93 = scmp.eq.s32.totalorder %s92, 0
      %s95 = sadd.s32 %s94, 1
      %s96 = scalar_select %p93, %s94, %s95
      %p99 = pneg %p93
      %p100 = scmp.eq.s32.totalorder %s21, 3
      %p101 = por %p99, %p100
      %p102 = scmp.ne.s32.totalorder %s94, %s97
      %p103 = scmp.eq.s32.totalorder %s21, 0
      %p104 = por %p102, %p103
      %p105 = scmp.ne.s32.totalorder %s94, %s97
      %p106 = scmp.eq.s32.totalorder %s26, 3
      %p107 = por %p105, %p106
      %p108 = scmp.ne.s32.totalorder %s97, %s98
      %p109 = scmp.eq.s32.totalorder %s26, 0
      %p110 = por %p108, %p109
      %p111 = scmp.ne.s32.totalorder %s97, %s98
      %p112 = scmp.eq.s32.totalorder %s27, 3
      %p113 = por %p111, %p112
      %p115 = scmp.ne.s32.totalorder %s98, %s114
      %p116 = scmp.eq.s32.totalorder %s27, 0
      %p117 = por %p115, %p116
      %s118 = ssub.s32 %s21, %s28
      %p119 = scmp.eq.s32.totalorder %s118, 0
      %s121 = sadd.s32 %s120, 1
      %s122 = scalar_select %p119, %s120, %s121
      %p125 = pneg %p119
      %p126 = scmp.eq.s32.totalorder %s21, 3
      %p127 = por %p125, %p126
      %p128 = scmp.ne.s32.totalorder %s120, %s123
      %p129 = scmp.eq.s32.totalorder %s21, 0
      %p130 = por %p128, %p129
      %p131 = scmp.ne.s32.totalorder %s120, %s123
      %p132 = scmp.eq.s32.totalorder %s26, 3
      %p133 = por %p131, %p132
      %p134 = scmp.ne.s32.totalorder %s123, %s124
      %p135 = scmp.eq.s32.totalorder %s26, 0
      %p136 = por %p134, %p135
      %p137 = scmp.ne.s32.totalorder %s123, %s124
      %p138 = scmp.eq.s32.totalorder %s27, 3
      %p139 = por %p137, %p138
      %p141 = scmp.ne.s32.totalorder %s124, %s140
      %p142 = scmp.eq.s32.totalorder %s27, 0
      %p143 = por %p141, %p142
      %s144 = ssub.s32 %s21, %s28
      %p145 = scmp.eq.s32.totalorder %s144, 0
      %s147 = sadd.s32 %s146, 1
      %s148 = scalar_select %p145, %s146, %s147
      %p151 = pneg %p145
      %p152 = scmp.eq.s32.totalorder %s21, 3
      %p153 = por %p151, %p152
      %p154 = scmp.ne.s32.totalorder %s146, %s149
      %p155 = scmp.eq.s32.totalorder %s21, 0
      %p156 = por %p154, %p155
      %p157 = scmp.ne.s32.totalorder %s146, %s149
      %p158 = scmp.eq.s32.totalorder %s26, 3
      %p159 = por %p157, %p158
      %p160 = scmp.ne.s32.totalorder %s149, %s150
      %p161 = scmp.eq.s32.totalorder %s26, 0
      %p162 = por %p160, %p161
      %p163 = scmp.ne.s32.totalorder %s149, %s150
      %p164 = scmp.eq.s32.totalorder %s27, 3
      %p165 = por %p163, %p164
      %p167 = scmp.ne.s32.totalorder %s150, %s166
      %p168 = scmp.eq.s32.totalorder %s27, 0
      %p169 = por %p167, %p168
      %p170 = scmp.le.s32.totalorder 1, %s21
      %p171 = scmp.lt.s32.totalorder %s21, 5
      %p172 = pnand %p170, %p171
      %p173 = pneg %p172
      // Predicated region
      $region9: #{tpu_custom_call.1} parent=5 // pred_check
        _
      $region10: #{tpu_custom_call.1} parent=5 // pred_check_branch
        %175 = sbr.rel (%p172) target = $region12
      $region11: #{tpu_custom_call.1} parent=5 // pred_region
        %s176 = ssub.s32 %s21, 1
        // Predicated region
        $region13: #{tpu_custom_call.1} parent=11 // pred_check
          %p177 = pneg %p42
        $region14: #{tpu_custom_call.1} parent=11 // pred_check_branch
          %179 = sbr.rel (%p177) target = $region16
        $region15: #{tpu_custom_call.1} parent=11 // pred_region
          _
        $region16: #{tpu_custom_call.1} parent=11 // pred_fallthru
          _
        // Predicated region
        $region17: #{tpu_custom_call.1} parent=11 // pred_check
          %p180 = pneg %p63
        $region18: #{tpu_custom_call.1} parent=11 // pred_check_branch
          %182 = sbr.rel (%p180) target = $region20
        $region19: #{tpu_custom_call.1} parent=11 // pred_region
          _
        $region20: #{tpu_custom_call.1} parent=11 // pred_fallthru
          _
        // Predicated region
        $region21: #{tpu_custom_call.1} parent=11 // pred_check
          %p183 = pneg %p84
        $region22: #{tpu_custom_call.1} parent=11 // pred_check_branch
          %185 = sbr.rel (%p183) target = $region24
        $region23: #{tpu_custom_call.1} parent=11 // pred_region
          _
        $region24: #{tpu_custom_call.1} parent=11 // pred_fallthru
          _
      $region12: #{tpu_custom_call.1} parent=5 // pred_fallthru
        _
      %p186 = scmp.lt.s32.totalorder %s21, 4
      // Predicated region
      $region25: #{tpu_custom_call.1} parent=5 // pred_check
        %p187 = pneg %p186
      $region26: #{tpu_custom_call.1} parent=5 // pred_check_branch
        %189 = sbr.rel (%p187) target = $region28
      $region27: #{tpu_custom_call.1} parent=5 // pred_region
        // Predicated region
        $region29: #{tpu_custom_call.1} parent=27 // pred_check
          %p190 = pneg %p104
        $region30: #{tpu_custom_call.1} parent=27 // pred_check_branch
          %192 = sbr.rel (%p190) target = $region32
        $region31: #{tpu_custom_call.1} parent=27 // pred_region
          %s193 = sand.u32 %s94, 1
          %s194 = scalar_lea.sflag [#allocation3], %s193
          %s195 = sand.u32 %s94, 1
          %s196 = smul.addr %s195, 128
          %s197 = scalar_lea.vmem [#allocation2], %s196
          %s198 = smul.u32 2, %s21
          %s200 = ssub.s32 2048, 2048
          %201 = vsyncadd %s194, %s200
          %s202 = smul.addr %s198, 64
          %s203 = scalar_lea.hbm %s3, %s202
          %s204 = sshll.u32 %s197, 4
          %s205 = int_to_ptr.vmem [resolvable:$true] %s204
          %210 = dma.hbm_to_vmem [thread:$0]  %s203, 2048, %s205, %s194, 512, 128, 8
        $region32: #{tpu_custom_call.1} parent=27 // pred_fallthru
          _
      $region28: #{tpu_custom_call.1} parent=5 // pred_fallthru
        _
      %p211 = scmp.le.s32.totalorder 1, %s21
      %p212 = scmp.lt.s32.totalorder %s21, 5
      %p213 = pnand %p211, %p212
      %p214 = pneg %p213
      // Predicated region
      $region33: #{tpu_custom_call.1} parent=5 // pred_check
        _
      $region34: #{tpu_custom_call.1} parent=5 // pred_check_branch
        %216 = sbr.rel (%p213) target = $region36
      $region35: #{tpu_custom_call.1} parent=5 // pred_region
        %s217 = ssub.s32 %s21, 1
        %s218 = sand.u32 %s97, 1
        %s219 = scalar_lea.sflag [#allocation3], %s218
        %s220 = sand.u32 %s97, 1
        %s221 = smul.addr %s220, 128
        %s222 = scalar_lea.vmem [#allocation2], %s221
        // Predicated region
        $region37: #{tpu_custom_call.1} parent=35 // pred_check
          %p223 = pneg %p110
        $region38: #{tpu_custom_call.1} parent=35 // pred_check_branch
          %225 = sbr.rel (%p223) target = $region40
        $region39: #{tpu_custom_call.1} parent=35 // pred_region
          %226 = dma.done %s219, 2048
        $region40: #{tpu_custom_call.1} parent=35 // pred_fallthru
          _
        %p227 = pneg %p42
        %p228 = pneg %p39
        %p229 = pneg %p63
        %p230 = pneg %p60
        %p231 = pneg %p84
        %p232 = pneg %p81
        %s233 = sand.u32 %s97, 1
        %s234 = scalar_lea.sflag [#allocation3], %s233
        %s235 = sand.u32 %s97, 1
        %s236 = smul.addr %s235, 128
        %s237 = scalar_lea.vmem [#allocation2], %s236
        %p238 = pneg %p110
        %p239 = pneg %p107
        %p240 = pneg %p136
        %p241 = pneg %p133
        %s242 = sand.u32 %s123, 1
        %s243 = scalar_lea.sflag [#allocation4], %s242
        %s244 = sand.u32 %s123, 1
        %s245 = smul.addr %s244, 16
        %s246 = scalar_lea.vmem [#allocation5], %s245
        %p247 = pneg %p162
        %p248 = pneg %p159
        %s249 = sand.u32 %s149, 1
        %s250 = scalar_lea.sflag [#allocation7], %s249
        %s251 = sand.u32 %s149, 1
        %s252 = smul.addr %s251, 16
        %s253 = scalar_lea.vmem [#allocation6], %s252
        %s254 = smul.u32 2, %s26
        %s255 = smul.u32 2, %s26
        %s256 = smul.u32 2, %s26
        %v258 = vld [vmem:[%s1] sm:$0xf]
        %v259 = vld [vmem:[%s222] sm:$0xff]
        %v260 = vld [vmem:[%s222 + $0x8] sm:$0xff]
        %v261 = vld [vmem:[%s222 + $0x10] sm:$0xff]
        %v262 = vld [vmem:[%s222 + $0x18] sm:$0xff]
        %v263 = vld [vmem:[%s222 + $0x20] sm:$0xff]
        %v264 = vld [vmem:[%s222 + $0x28] sm:$0xff]
        %v265 = vld [vmem:[%s222 + $0x30] sm:$0xff]
        %v266 = vld [vmem:[%s222 + $0x38] sm:$0xff]
        %v267 = vld [vmem:[%s222 + $0x40] sm:$0xff]
        %v268 = vld [vmem:[%s222 + $0x48] sm:$0xff]
        %v269 = vld [vmem:[%s222 + $0x50] sm:$0xff]
        %v270 = vld [vmem:[%s222 + $0x58] sm:$0xff]
        %v271 = vld [vmem:[%s222 + $0x60] sm:$0xff]
        %v272 = vld [vmem:[%s222 + $0x68] sm:$0xff]
        %v273 = vld [vmem:[%s222 + $0x70] sm:$0xff]
        %v274 = vld [vmem:[%s222 + $0x78] sm:$0xff]
        %v291 = vunpack.c.l.b16 %v259
        %v292 = vunpack.c.h.b16 %v259
        %v293 = vunpack.c.l.b16 %v260
        %v294 = vunpack.c.h.b16 %v260
        %v295 = vunpack.c.l.b16 %v261
        %v296 = vunpack.c.h.b16 %v261
        %v297 = vunpack.c.l.b16 %v262
        %v298 = vunpack.c.h.b16 %v262
        %v299 = vunpack.c.l.b16 %v263
        %v300 = vunpack.c.h.b16 %v263
        %v301 = vunpack.c.l.b16 %v264
        %v302 = vunpack.c.h.b16 %v264
        %v303 = vunpack.c.l.b16 %v265
        %v304 = vunpack.c.h.b16 %v265
        %v305 = vunpack.c.l.b16 %v266
        %v306 = vunpack.c.h.b16 %v266
        %v307 = vunpack.c.l.b16 %v267
        %v308 = vunpack.c.h.b16 %v267
        %v309 = vunpack.c.l.b16 %v268
        %v310 = vunpack.c.h.b16 %v268
        %v311 = vunpack.c.l.b16 %v269
        %v312 = vunpack.c.h.b16 %v269
        %v313 = vunpack.c.l.b16 %v270
        %v314 = vunpack.c.h.b16 %v270
        %v315 = vunpack.c.l.b16 %v271
        %v316 = vunpack.c.h.b16 %v271
        %v317 = vunpack.c.l.b16 %v272
        %v318 = vunpack.c.h.b16 %v272
        %v319 = vunpack.c.l.b16 %v273
        %v320 = vunpack.c.h.b16 %v273
        %v321 = vunpack.c.l.b16 %v274
        %v322 = vunpack.c.h.b16 %v274
        %v323 = vpack.c.b16 %v293, %v291
        %v324 = vpack.c.b16 %v294, %v292
        %v325 = vpack.c.b16 %v297, %v295
        %v326 = vpack.c.b16 %v298, %v296
        %v327 = vpack.c.b16 %v301, %v299
        %v328 = vpack.c.b16 %v302, %v300
        %v329 = vpack.c.b16 %v305, %v303
        %v330 = vpack.c.b16 %v306, %v304
        %v331 = vpack.c.b16 %v309, %v307
        %v332 = vpack.c.b16 %v310, %v308
        %v333 = vpack.c.b16 %v313, %v311
        %v334 = vpack.c.b16 %v314, %v312
        %v335 = vpack.c.b16 %v317, %v315
        %v336 = vpack.c.b16 %v318, %v316
        %v337 = vpack.c.b16 %v321, %v319
        %v338 = vpack.c.b16 %v322, %v320
        %355 = vmatprep.subr.bf16.mxu0 %v324
        %356 = vmatpush1.bf16.msra.mxu0 %v323
        %357 = vmatprep.subr.bf16.mxu0 %v326
        %358 = vmatpush1.bf16.msra.mxu0 %v325
        %359 = vmatprep.subr.bf16.mxu0 %v328
        %360 = vmatpush1.bf16.msra.mxu0 %v327
        %361 = vmatprep.subr.bf16.mxu0 %v330
        %362 = vmatpush1.bf16.msra.mxu0 %v329
        %363 = vmatprep.subr.bf16.mxu0 %v332
        %364 = vmatpush1.bf16.msra.mxu0 %v331
        %365 = vmatprep.subr.bf16.mxu0 %v334
        %366 = vmatpush1.bf16.msra.mxu0 %v333
        %367 = vmatprep.subr.bf16.mxu0 %v336
        %368 = vmatpush1.bf16.msra.mxu0 %v335
        %369 = vmatprep.subr.bf16.mxu0 %v338
        %370 = vmatpush1.bf16.msra.mxu0 %v337
        %371 = vmatprep.subr.bf16.mxu0 0
        %372 = vmatpush1.bf16.msra.mxu0 0
        %373 = vmatprep.subr.bf16.mxu0 0
        %374 = vmatpush1.bf16.msra.mxu0 0
        %375 = vmatprep.subr.bf16.mxu0 0
        %376 = vmatpush1.bf16.msra.mxu0 0
        %377 = vmatprep.subr.bf16.mxu0 0
        %378 = vmatpush1.bf16.msra.mxu0 0
        %379 = vmatprep.subr.bf16.mxu0 0
        %380 = vmatpush1.bf16.msra.mxu0 0
        %381 = vmatprep.subr.bf16.mxu0 0
        %382 = vmatpush1.bf16.msra.mxu0 0
        %383 = vmatprep.subr.bf16.mxu0 0
        %384 = vmatpush1.bf16.msra.mxu0 0
        %385 = vmatprep.subr.bf16.mxu0 0
        %386 = vmatpush1.bf16.msra.mxu0 0
        %387 = vmatprep.mubr.bf16.mxu0 0
        %388 = vmatmul.mubr.bf16.gmra.mrb[0].mxu0 %v258
        %v389 = vpop.f32.mrb[0].mxu0
        %v390 = vadd.f32 0.0, %v389
        %v391 = vpop.f32.mrb[0].mxu0
        %v392 = vadd.f32 0.0, %v391
        %v393 = vpop.f32.mrb[0].mxu0
        %v394 = vpop.f32.mrb[0].mxu0
        %395 = vdwg.mxu0
        %v396 = vld [vmem:[%s2] sm:$0xff]
        %398 = vset.pattern.permute.xlu0 0
        %399 = vperm.xlu0 %398, %v396
        %v400 = vpop.permute.xlu0 %399
        %v402 = vmul.f32 %v390, %v400
        %v403 = vmul.f32 %v392, %v400
        %v404 = vmax.f32 %v402, -1.0
        %v405 = vmax.f32 %v403, -1.0
        %v406 = vmin.f32 %v404, 1.0
        %v407 = vmin.f32 %v405, 1.0
        %v408 = vmul.f32 %v406, %v406
        %v409 = vmul.f32 %v407, %v407
        %v410 = vsub.f32 1.0, %v408
        %v411 = vsub.f32 1.0, %v409
        %v412 = vmax.f32 %v410, 0.0
        %v413 = vmax.f32 %v411, 0.0
        %v414 = vrsqrt.pop %v412
        %v415 = vmul.f32 %v412, %v414
        %vm416 = vcmp.eq.f32.partialorder %v412, inf
        %v417 = vsel %vm416, %v412, %v415
        %vm418 = vcmp.eq.f32.partialorder %v412, 0.0
        %v419 = vand.u32 %v412, 2147483648
        %v420 = vsel %vm418, %v419, %v417
        %v421 = vrsqrt.pop %v413
        %v422 = vmul.f32 %v413, %v421
        %vm423 = vcmp.eq.f32.partialorder %v413, inf
        %v424 = vsel %vm423, %v413, %v422
        %vm425 = vcmp.eq.f32.partialorder %v413, 0.0
        %v426 = vand.u32 %v413, 2147483648
        %v427 = vsel %vm425, %v426, %v424
        %v428 = vmul.f32 %v406, 0.87758255
        %v429 = vmul.f32 %v407, 0.87758255
        %v430 = vmul.f32 %v420, 0.47942555
        %v431 = vmul.f32 %v427, 0.47942555
        %v432 = vsub.f32 %v428, %v430
        %v433 = vsub.f32 %v429, %v431
        %vm434 = vcmp.gt.f32.partialorder %v406, -0.87758255
        %vm435 = vcmp.gt.f32.partialorder %v407, -0.87758255
        %v436 = vsub.f32 %v406, 0.23971277
        %v437 = vsub.f32 %v407, 0.23971277
        %v438 = vsel %vm434, %v432, %v436
        %v439 = vsel %vm435, %v433, %v437
        %v440 = vld [vmem:[%s0] sm:$0xff]
        %v441 = vlaneseq
        %v442 = vand.u32 %v441, 127
        %v443 = vadd.s32 %v442, 128
        %s444 = smul.u32 %s26, 256
        %v445 = vstv %s444
        %v446 = vadd.s32 %v442, %v445
        %v447 = vadd.s32 %v443, %v445
        %448 = vset.pattern.permute.xlu0 0
        %449 = vperm.xlu0 %448, %v440
        %v450 = vpop.permute.xlu0 %449
        %vm451 = vcmp.eq.s32.totalorder %v446, %v450
        %vm452 = vcmp.eq.s32.totalorder %v447, %v450
        %v453 = vmul.f32 %v406, 64.0
        %v454 = vmul.f32 %v407, 64.0
        %v455 = vmul.f32 %v438, 64.0
        %v456 = vmul.f32 %v439, 64.0
        %v457 = vsel %vm451, %v455, %v453
        %v458 = vsel %vm452, %v456, %v454
        %459 = vst [vmem:[%s246] sm:$0xff] %v457
        %460 = vst [vmem:[%s246 + $0x8] sm:$0xff] %v458
        %461 = vst [vmem:[%s253] sm:$0xff] %v453
        %462 = vst [vmem:[%s253 + $0x8] sm:$0xff] %v454
        %s463 = sand.u32 %s123, 1
        %s464 = scalar_lea.sflag [#allocation4], %s463
        %s465 = sand.u32 %s123, 1
        %s466 = smul.addr %s465, 16
        %s467 = scalar_lea.vmem [#allocation5], %s466
        %s468 = sand.u32 %s149, 1
        %s469 = scalar_lea.sflag [#allocation7], %s468
        %s470 = sand.u32 %s149, 1
        %s471 = smul.addr %s470, 16
        %s472 = scalar_lea.vmem [#allocation6], %s471
        // Predicated region
        $region41: #{tpu_custom_call.1} parent=35 // pred_check
          %p473 = pneg %p133
        $region42: #{tpu_custom_call.1} parent=35 // pred_check_branch
          %475 = sbr.rel (%p473) target = $region44
        $region43: #{tpu_custom_call.1} parent=35 // pred_region
          %s476 = smul.u32 2, %s26
          %s478 = ssub.s32 256, 256
          %479 = vsyncadd %s464, %s478
          %s480 = smul.addr %s476, 128
          %s481 = scalar_lea.hbm %s4, %s480
          %s483 = sshll.u32 %s467, 4
          %s484 = int_to_ptr.vmem [resolvable:$true] %s483
          %486 = dma.vmem_to_hbm [thread:$0]  %s484, 256, %s481, %s464
        $region44: #{tpu_custom_call.1} parent=35 // pred_fallthru
          _
        // Predicated region
        $region45: #{tpu_custom_call.1} parent=35 // pred_check
          %p487 = pneg %p159
        $region46: #{tpu_custom_call.1} parent=35 // pred_check_branch
          %489 = sbr.rel (%p487) target = $region48
        $region47: #{tpu_custom_call.1} parent=35 // pred_region
          %s490 = smul.u32 2, %s26
          %s492 = ssub.s32 256, 256
          %493 = vsyncadd %s469, %s492
          %s494 = smul.addr %s490, 128
          %s495 = scalar_lea.hbm %s5, %s494
          %s497 = sshll.u32 %s472, 4
          %s498 = int_to_ptr.vmem [resolvable:$true] %s497
          %500 = dma.vmem_to_hbm [thread:$0]  %s498, 256, %s495, %s469
        $region48: #{tpu_custom_call.1} parent=35 // pred_fallthru
          _
      $region36: #{tpu_custom_call.1} parent=5 // pred_fallthru
        _
      %p501 = scmp.le.s32.totalorder 2, %s21
      // Predicated region
      $region49: #{tpu_custom_call.1} parent=5 // pred_check
        %p502 = pneg %p501
      $region50: #{tpu_custom_call.1} parent=5 // pred_check_branch
        %504 = sbr.rel (%p502) target = $region52
      $region51: #{tpu_custom_call.1} parent=5 // pred_region
        %s505 = ssub.s32 %s21, 2
        // Predicated region
        $region53: #{tpu_custom_call.1} parent=51 // pred_check
          %p506 = pneg %p139
        $region54: #{tpu_custom_call.1} parent=51 // pred_check_branch
          %508 = sbr.rel (%p506) target = $region56
        $region55: #{tpu_custom_call.1} parent=51 // pred_region
          %s509 = sand.u32 %s124, 1
          %s510 = scalar_lea.sflag [#allocation4], %s509
          %s511 = sand.u32 %s124, 1
          %s512 = smul.addr %s511, 16
          %s513 = scalar_lea.vmem [#allocation5], %s512
          %514 = dma.done %s510, 256
        $region56: #{tpu_custom_call.1} parent=51 // pred_fallthru
          _
        // Predicated region
        $region57: #{tpu_custom_call.1} parent=51 // pred_check
          %p515 = pneg %p165
        $region58: #{tpu_custom_call.1} parent=51 // pred_check_branch
          %517 = sbr.rel (%p515) target = $region60
        $region59: #{tpu_custom_call.1} parent=51 // pred_region
          %s518 = sand.u32 %s150, 1
          %s519 = scalar_lea.sflag [#allocation7], %s518
          %s520 = sand.u32 %s150, 1
          %s521 = smul.addr %s520, 16
          %s522 = scalar_lea.vmem [#allocation6], %s521
          %523 = dma.done %s519, 256
        $region60: #{tpu_custom_call.1} parent=51 // pred_fallthru
          _
      $region52: #{tpu_custom_call.1} parent=5 // pred_fallthru
        _
    $region6: #{tpu_custom_call.1} parent=1 // loop_footer
      %s25 = sadd.s32 1, %s21
    $region7: #{tpu_custom_call.1} parent=1 // loop_footer_branch
      %20 = sbr.rel target = $region3
    $region8: #{tpu_custom_call.1} parent=1 // loop_exit
      _
    %524 = vsyncpa [#allocation3], 1
    %s525 = scalar_lea.sflag [#allocation3], 1
    %526 = vsyncpa %s525, 1
    %527 = vsyncpa [#allocation4], 1
    %s528 = scalar_lea.sflag [#allocation4], 1
    %529 = vsyncpa %s528, 1
    %530 = vsyncpa [#allocation7], 1
    %s531 = scalar_lea.sflag [#allocation7], 1
    %532 = vsyncpa %s531, 1

</llo_original>
